<compile_context>
chip_gen: v6e
topology: v6e:2x2x1
jax: 0.10.0
libtpu: 0.0.40
codegen_flags: <defaults>
</compile_context>

<pallas_src>
import functools
import math

import jax
import jax.numpy as jnp
from jax import lax
from jax.experimental import pallas as pl
from jax.experimental.pallas import tpu as pltpu


def _round_up(x, m):
    return ((x + m - 1) // m) * m


def _stable_softplus(z):
    # softplus(z) = max(z, 0) + log(1 + exp(-|z|)); uses only exp/log/max/abs so
    # it lowers cleanly on Mosaic (2 EUP ops per element).
    return jnp.maximum(z, 0.0) + jnp.log(1.0 + jnp.exp(-jnp.abs(z)))


def _flipped_loss_kl_kernel(x_ref, xf_ref, t_ref, loss_ref, kl_ref, kl_acc, *,
                            inv_columns, log_eps):
    i = pl.program_id(0)
    n = pl.num_programs(0)

    x = x_ref[...].astype(jnp.float32)    # (TB, C)  logits
    xf = xf_ref[...].astype(jnp.float32)  # (TB, C)  flipped-branch logits
    t = t_ref[...].astype(jnp.float32)    # (TB, 1)  targets

    c = x.shape[1]

    # ---- p branch: one softplus + one exp per element ------------------------
    sp_nx = _stable_softplus(-x)
    logp_u = -sp_nx                              # log(sigmoid(x))      (exact)
    log1mp_u = logp_u - x                        # log(1 - sigmoid(x)) = -softplus(x)
    p = jnp.exp(logp_u)                          # sigmoid(x)
    logp_c = jnp.maximum(logp_u, log_eps)        # log(clamp(p,   eps))
    log1mp_c = jnp.maximum(log1mp_u, log_eps)    # log(clamp(1-p, eps))

    # ---- q branch -------------------------------------------------------------
    sp_nxf = _stable_softplus(-xf)
    logq_u = -sp_nxf
    log1mq_u = logq_u - xf
    q = jnp.exp(logq_u)
    logq_c = jnp.maximum(logq_u, log_eps)
    log1mq_c = jnp.maximum(log1mq_u, log_eps)

    # ---- per-row terms (row max / row sum are column-flip invariant) ----------
    l22 = -t * jnp.max(logp_c, axis=1, keepdims=True)
    l21 = -(1.0 - t) * (jnp.sum(log1mp_c, axis=1, keepdims=True) * inv_columns)
    l22f = -t * jnp.max(logq_c, axis=1, keepdims=True)
    l21f = -(1.0 - t) * (jnp.sum(log1mq_c, axis=1, keepdims=True) * inv_columns)
    loss_ref[...] = (l21 + l22 + l22f + l21f).astype(loss_ref.dtype)

    # ---- KL cross terms need fliplr pairing ------------------------------------
    # Reverse the finite p-side tiles in-kernel with an anti-identity permutation
    # matmul (exact in f32 at HIGHEST precision; MXU is otherwise idle), so no
    # flipped copy is ever written to HBM.
    row = lax.broadcasted_iota(jnp.int32, (c, c), 0)
    col = lax.broadcasted_iota(jnp.int32, (c, c), 1)
    rev = (row + col == c - 1).astype(jnp.float32)           # anti-identity
    logp_rev = jnp.dot(logp_c, rev, preferred_element_type=jnp.float32,
                       precision=lax.Precision.HIGHEST)      # logp_c[:, ::-1]
    p_rev = jnp.dot(p, rev, preferred_element_type=jnp.float32,
                    precision=lax.Precision.HIGHEST)         # p[:, ::-1]

    # nn.KLDivLoss(reduction='sum'): sum(target * (log(target) - input)),
    # with the contribution zeroed where target == 0 (PyTorch semantics).
    #   kl1 = sum(qflip * (log qflip - log(clamp(p, eps))))
    #   kl2 = sum(p     * (log p     - log qflip))
    kl1 = (jnp.sum(jnp.where(q > 0.0, q * logq_u, 0.0))
           - jnp.sum(q * logp_rev))
    kl2 = (jnp.sum(jnp.where(p > 0.0, p * logp_u, 0.0))
           - jnp.sum(jnp.where(p_rev > 0.0, p_rev * logq_u, 0.0)))
    kl_blk = kl1 + kl2

    # ---- full-batch KL accumulation across the (serial) batch grid -------------
    @pl.when(i == 0)
    def _():
        kl_acc[0] = 0.0

    kl_acc[0] = kl_acc[0] + kl_blk

    @pl.when(i == n - 1)
    def _():
        kl_ref[0, 0] = kl_acc[0]


def _choose_block_rows(batch, num_columns):
    # ~512 KiB of f32 per input block: big enough for DMA efficiency, small
    # enough that 2 inputs x 2 pipeline buffers + intermediates fit the default
    # scoped VMEM on every TPU generation (v5e 16 MiB ... v7x).
    budget_rows = max(8, ((512 * 1024) // (4 * max(num_columns, 1))) // 8 * 8)
    tb = min(_round_up(batch, 8), 1024, budget_rows)
    return max(8, (tb // 8) * 8)


def multi_head_flipped_loss_kl(inputs, flipped_inputs, targets, *, num_columns,
                               reduction="mean", eps=1e-12, lambda_kl=1.0,
                               block_rows=None):
    assert inputs.ndim == 2 and flipped_inputs.shape == inputs.shape
    batch, cols = inputs.shape
    assert cols == num_columns
    assert targets.shape == (batch,)

    tb = block_rows if block_rows is not None else _choose_block_rows(batch, cols)
    assert tb % 8 == 0
    b_pad = _round_up(batch, tb)
    n_blocks = b_pad // tb

    x = inputs                       # native dtype; cast to f32 inside the kernel
    xf = flipped_inputs
    t2d = targets.reshape(batch, 1)
    if b_pad != batch:
        # Zero-padded rows contribute exactly 0 to the KL sum; their per-row
        # losses are sliced off below.
        x = jnp.pad(x, ((0, b_pad - batch), (0, 0)))
        xf = jnp.pad(xf, ((0, b_pad - batch), (0, 0)))
        t2d = jnp.pad(t2d, ((0, b_pad - batch), (0, 0)))

    kernel = functools.partial(
        _flipped_loss_kl_kernel,
        inv_columns=1.0 / float(num_columns),
        log_eps=float(math.log(eps)))

    loss_local, kl_sum = pl.pallas_call(
        kernel,
        out_shape=(jax.ShapeDtypeStruct((b_pad, 1), jnp.float32),
                   jax.ShapeDtypeStruct((1, 1), jnp.float32)),
        grid_spec=pltpu.PrefetchScalarGridSpec(
            num_scalar_prefetch=0,
            grid=(n_blocks,),
            in_specs=[
                pl.BlockSpec((tb, cols), lambda i: (i, 0)),
                pl.BlockSpec((tb, cols), lambda i: (i, 0)),
                pl.BlockSpec((tb, 1), lambda i: (i, 0)),
            ],
            out_specs=(
                pl.BlockSpec((tb, 1), lambda i: (i, 0)),
                pl.BlockSpec(memory_space=pltpu.MemorySpace.SMEM),
            ),
            scratch_shapes=[pltpu.SMEM((1,), jnp.float32)],
        ),
        compiler_params=pltpu.CompilerParams(
            dimension_semantics=("arbitrary",)),
    )(x, xf, t2d)

    l3 = 0.5 * kl_sum[0, 0]
    loss = loss_local[:batch, 0] + lambda_kl * l3
    if reduction == "mean":
        return jnp.mean(loss)
    return loss


def _reference(inputs, flipped_inputs, targets, num_columns, *, reduction="mean",
               eps=1e-12, lambda_kl=1.0):
    """Pure-JAX mirror of the PyTorch forward."""
    p = jax.nn.sigmoid(inputs.astype(jnp.float32))
    q = jax.nn.sigmoid(flipped_inputs.astype(jnp.float32))
    qflip = jnp.flip(q, axis=1)
    t = targets.astype(jnp.float32)
    logp = jnp.log(jnp.maximum(p, eps))
    logq = jnp.log(jnp.maximum(q, eps))
    log_false_p = jnp.log(jnp.maximum(1.0 - p, eps))
    log_false_q = jnp.log(jnp.maximum(1.0 - q, eps))
    l22 = -t * jnp.max(logp, axis=1)
    l21 = -(1.0 - t) * jnp.sum(log_false_p, axis=1) / num_columns
    kl1 = jnp.sum(qflip * (jnp.log(qflip) - logp))
    kl2 = jnp.sum(p * (jnp.log(p) - jnp.log(qflip)))
    l3 = 0.5 * (kl1 + kl2)
    l22f = -t * jnp.max(logq, axis=1)
    l21f = -(1.0 - t) * jnp.sum(log_false_q, axis=1) / num_columns
    loss = l21 + l22 + lambda_kl * l3 + l22f + l21f
    if reduction == "mean":
        return jnp.mean(loss)
    return loss


if __name__ == "__main__":
    key = jax.random.PRNGKey(0)

    # Case 1: single block (batch fits one tile); check 'none' and 'mean'.
    b1, c1 = 8, 16
    k1, k2, k3, key = jax.random.split(key, 4)
    x1 = jax.random.normal(k1, (b1, c1), dtype=jnp.float32)
    xf1 = jax.random.normal(k2, (b1, c1), dtype=jnp.float32)
    t1 = jax.random.bernoulli(k3, 0.5, (b1,)).astype(jnp.float32)

    out_none = multi_head_flipped_loss_kl(x1, xf1, t1, num_columns=c1,
                                          reduction="none")
    out_mean = multi_head_flipped_loss_kl(x1, xf1, t1, num_columns=c1,
                                          reduction="mean")
    out_none, out_mean = jax.block_until_ready((out_none, out_mean))
    ref_none = _reference(x1, xf1, t1, c1, reduction="none")
    ref_mean = _reference(x1, xf1, t1, c1, reduction="mean")
    assert jnp.allclose(out_none, ref_none, rtol=1e-5, atol=1e-4), (out_none, ref_none)
    assert jnp.allclose(out_mean, ref_mean, rtol=1e-5, atol=1e-4), (out_mean, ref_mean)

    # Case 2: multi-block grid with row padding (exercises the KL accumulator
    # across grid steps and the zero-padding path).
    b2, c2 = 40, 16
    k1, k2, k3, key = jax.random.split(key, 4)
    x2 = jax.random.normal(k1, (b2, c2), dtype=jnp.float32)
    xf2 = jax.random.normal(k2, (b2, c2), dtype=jnp.float32)
    t2 = jax.random.bernoulli(k3, 0.5, (b2,)).astype(jnp.float32)

    out2 = multi_head_flipped_loss_kl(x2, xf2, t2, num_columns=c2,
                                      reduction="mean", block_rows=16)
    out2 = jax.block_until_ready(out2)
    ref2 = _reference(x2, xf2, t2, c2, reduction="mean")
    assert jnp.allclose(out2, ref2, rtol=1e-5, atol=1e-4), (out2, ref2)

    print("KERNEL_OK")
</pallas_src>

<mosaic_0001>
module attributes {stable_mosaic.version = 11 : i64} {
  func.func @_flipped_loss_kl_kernel(%arg0: i32, %arg1: memref<8x16xf32, #tpu.memory_space<vmem>>, %arg2: memref<8x16xf32, #tpu.memory_space<vmem>>, %arg3: memref<8x1xf32, #tpu.memory_space<vmem>>, %arg4: memref<8x1xf32, #tpu.memory_space<vmem>>, %arg5: memref<1x1xf32, #tpu.memory_space<smem>>, %arg6: memref<1xf32, #tpu.memory_space<smem>>) attributes {dimension_semantics = [#tpu.dimension_semantics<arbitrary>], iteration_bounds = array<i64: 1>, scalar_prefetch = 0 : i64, scratch_operands = 1 : i64, tpu.core_type = #tpu.core_type<tc>, window_params = [{transform_indices = @transform_0, window_bounds = array<i64: 8, 16>}, {transform_indices = @transform_1, window_bounds = array<i64: 8, 16>}, {transform_indices = @transform_2, window_bounds = array<i64: 8, 1>}, {transform_indices = @transform_3, window_bounds = array<i64: 8, 1>}, {transform_indices = @transform_4, window_bounds = array<i64: 1, 1>}]} {
    %c0 = arith.constant 0 : index
    %c0_0 = arith.constant 0 : index
    %0 = vector.load %arg1[%c0, %c0_0] : memref<8x16xf32, #tpu.memory_space<vmem>>, vector<8x16xf32>
    %c0_1 = arith.constant 0 : index
    %c0_2 = arith.constant 0 : index
    %1 = vector.load %arg2[%c0_1, %c0_2] : memref<8x16xf32, #tpu.memory_space<vmem>>, vector<8x16xf32>
    %c0_3 = arith.constant 0 : index
    %c0_4 = arith.constant 0 : index
    %2 = vector.load %arg3[%c0_3, %c0_4] : memref<8x1xf32, #tpu.memory_space<vmem>>, vector<8x1xf32>
    %cst = arith.constant 0.000000e+00 : f32
    %3 = vector.broadcast %cst : f32 to vector<8x16xf32>
    %4 = arith.subf %3, %0 : vector<8x16xf32>
    %cst_5 = arith.constant 0.000000e+00 : f32
    %5 = vector.broadcast %cst_5 : f32 to vector<8x16xf32>
    %6 = arith.maximumf %4, %5 : vector<8x16xf32>
    %7 = math.absf %4 : vector<8x16xf32>
    %cst_6 = arith.constant 0.000000e+00 : f32
    %8 = vector.broadcast %cst_6 : f32 to vector<8x16xf32>
    %9 = arith.subf %8, %7 : vector<8x16xf32>
    %10 = math.exp %9 : vector<8x16xf32>
    %cst_7 = arith.constant 1.000000e+00 : f32
    %11 = vector.broadcast %cst_7 : f32 to vector<8x16xf32>
    %12 = arith.addf %11, %10 : vector<8x16xf32>
    %13 = math.log %12 : vector<8x16xf32>
    %14 = arith.addf %6, %13 : vector<8x16xf32>
    %cst_8 = arith.constant 0.000000e+00 : f32
    %15 = vector.broadcast %cst_8 : f32 to vector<8x16xf32>
    %16 = arith.subf %15, %14 : vector<8x16xf32>
    %17 = arith.subf %16, %0 : vector<8x16xf32>
    %18 = math.exp %16 : vector<8x16xf32>
    %cst_9 = arith.constant -27.6310215 : f32
    %19 = vector.broadcast %cst_9 : f32 to vector<8x16xf32>
    %20 = arith.maximumf %16, %19 : vector<8x16xf32>
    %cst_10 = arith.constant -27.6310215 : f32
    %21 = vector.broadcast %cst_10 : f32 to vector<8x16xf32>
    %22 = arith.maximumf %17, %21 : vector<8x16xf32>
    %cst_11 = arith.constant 0.000000e+00 : f32
    %23 = vector.broadcast %cst_11 : f32 to vector<8x16xf32>
    %24 = arith.subf %23, %1 : vector<8x16xf32>
    %cst_12 = arith.constant 0.000000e+00 : f32
    %25 = vector.broadcast %cst_12 : f32 to vector<8x16xf32>
    %26 = arith.maximumf %24, %25 : vector<8x16xf32>
    %27 = math.absf %24 : vector<8x16xf32>
    %cst_13 = arith.constant 0.000000e+00 : f32
    %28 = vector.broadcast %cst_13 : f32 to vector<8x16xf32>
    %29 = arith.subf %28, %27 : vector<8x16xf32>
    %30 = math.exp %29 : vector<8x16xf32>
    %cst_14 = arith.constant 1.000000e+00 : f32
    %31 = vector.broadcast %cst_14 : f32 to vector<8x16xf32>
    %32 = arith.addf %31, %30 : vector<8x16xf32>
    %33 = math.log %32 : vector<8x16xf32>
    %34 = arith.addf %26, %33 : vector<8x16xf32>
    %cst_15 = arith.constant 0.000000e+00 : f32
    %35 = vector.broadcast %cst_15 : f32 to vector<8x16xf32>
    %36 = arith.subf %35, %34 : vector<8x16xf32>
    %37 = arith.subf %36, %1 : vector<8x16xf32>
    %38 = math.exp %36 : vector<8x16xf32>
    %cst_16 = arith.constant -27.6310215 : f32
    %39 = vector.broadcast %cst_16 : f32 to vector<8x16xf32>
    %40 = arith.maximumf %36, %39 : vector<8x16xf32>
    %cst_17 = arith.constant -27.6310215 : f32
    %41 = vector.broadcast %cst_17 : f32 to vector<8x16xf32>
    %42 = arith.maximumf %37, %41 : vector<8x16xf32>
    %cst_18 = arith.constant 0.000000e+00 : f32
    %43 = vector.broadcast %cst_18 : f32 to vector<8x1xf32>
    %44 = arith.subf %43, %2 : vector<8x1xf32>
    %cst_19 = arith.constant dense<0xFF800000> : vector<8xf32>
    %45 = vector.multi_reduction <maximumf>, %20, %cst_19 [1] : vector<8x16xf32> to vector<8xf32>
    %46 = vector.shape_cast %45 : vector<8xf32> to vector<8x1xf32>
    %47 = arith.mulf %44, %46 : vector<8x1xf32>
    %cst_20 = arith.constant 1.000000e+00 : f32
    %48 = vector.broadcast %cst_20 : f32 to vector<8x1xf32>
    %49 = arith.subf %48, %2 : vector<8x1xf32>
    %cst_21 = arith.constant 0.000000e+00 : f32
    %50 = vector.broadcast %cst_21 : f32 to vector<8x1xf32>
    %51 = arith.subf %50, %49 : vector<8x1xf32>
    %cst_22 = arith.constant dense<0.000000e+00> : vector<8xf32>
    %52 = vector.multi_reduction <add>, %22, %cst_22 [1] : vector<8x16xf32> to vector<8xf32>
    %53 = vector.shape_cast %52 : vector<8xf32> to vector<8x1xf32>
    %cst_23 = arith.constant 6.250000e-02 : f32
    %54 = vector.broadcast %cst_23 : f32 to vector<8x1xf32>
    %55 = arith.mulf %53, %54 : vector<8x1xf32>
    %56 = arith.mulf %51, %55 : vector<8x1xf32>
    %cst_24 = arith.constant 0.000000e+00 : f32
    %57 = vector.broadcast %cst_24 : f32 to vector<8x1xf32>
    %58 = arith.subf %57, %2 : vector<8x1xf32>
    %cst_25 = arith.constant dense<0xFF800000> : vector<8xf32>
    %59 = vector.multi_reduction <maximumf>, %40, %cst_25 [1] : vector<8x16xf32> to vector<8xf32>
    %60 = vector.shape_cast %59 : vector<8xf32> to vector<8x1xf32>
    %61 = arith.mulf %58, %60 : vector<8x1xf32>
    %cst_26 = arith.constant 1.000000e+00 : f32
    %62 = vector.broadcast %cst_26 : f32 to vector<8x1xf32>
    %63 = arith.subf %62, %2 : vector<8x1xf32>
    %cst_27 = arith.constant 0.000000e+00 : f32
    %64 = vector.broadcast %cst_27 : f32 to vector<8x1xf32>
    %65 = arith.subf %64, %63 : vector<8x1xf32>
    %cst_28 = arith.constant dense<0.000000e+00> : vector<8xf32>
    %66 = vector.multi_reduction <add>, %42, %cst_28 [1] : vector<8x16xf32> to vector<8xf32>
    %67 = vector.shape_cast %66 : vector<8xf32> to vector<8x1xf32>
    %cst_29 = arith.constant 6.250000e-02 : f32
    %68 = vector.broadcast %cst_29 : f32 to vector<8x1xf32>
    %69 = arith.mulf %67, %68 : vector<8x1xf32>
    %70 = arith.mulf %65, %69 : vector<8x1xf32>
    %71 = arith.addf %56, %47 : vector<8x1xf32>
    %72 = arith.addf %71, %61 : vector<8x1xf32>
    %73 = arith.addf %72, %70 : vector<8x1xf32>
    %c0_30 = arith.constant 0 : index
    %c0_31 = arith.constant 0 : index
    %74 = vector.load %arg4[%c0_30, %c0_31] : memref<8x1xf32, #tpu.memory_space<vmem>>, vector<8x1xf32>
    tpu.vector_store %arg4[%c0_30, %c0_31], %73 {strides = array<i32>} : memref<8x1xf32, #tpu.memory_space<vmem>>, vector<8x1xf32>,
    %75 = tpu.iota {dimensions = array<i32: 0>} : vector<16x16xi32>
    %76 = tpu.iota {dimensions = array<i32: 1>} : vector<16x16xi32>
    %77 = arith.addi %75, %76 : vector<16x16xi32>
    %c15_i32 = arith.constant 15 : i32
    %78 = vector.broadcast %c15_i32 : i32 to vector<16x16xi32>
    %79 = arith.cmpi eq, %77, %78 : vector<16x16xi32>
    %80 = arith.extui %79 : vector<16x16xi1> to vector<16x16xi32>
    %81 = arith.sitofp %80 : vector<16x16xi32> to vector<16x16xf32>
    %cst_32 = arith.constant dense<0.000000e+00> : vector<8x16xf32>
    %82 = tpu.matmul %20, %81, %cst_32 {dimension_numbers = #tpu.dot_dimension_numbers<[1], [0], [0], [1], [0, 0, 1, 1], [], []>, precision = #tpu.contract_precision<fp32>} : vector<8x16xf32>, vector<16x16xf32>, vector<8x16xf32> -> vector<8x16xf32>
    %cst_33 = arith.constant dense<0.000000e+00> : vector<8x16xf32>
    %83 = tpu.matmul %18, %81, %cst_33 {dimension_numbers = #tpu.dot_dimension_numbers<[1], [0], [0], [1], [0, 0, 1, 1], [], []>, precision = #tpu.contract_precision<fp32>} : vector<8x16xf32>, vector<16x16xf32>, vector<8x16xf32> -> vector<8x16xf32>
    %cst_34 = arith.constant 0.000000e+00 : f32
    %84 = vector.broadcast %cst_34 : f32 to vector<8x16xf32>
    %85 = arith.cmpf ogt, %38, %84 : vector<8x16xf32>
    %86 = arith.mulf %38, %36 : vector<8x16xf32>
    %cst_35 = arith.constant 0.000000e+00 : f32
    %87 = vector.broadcast %cst_35 : f32 to vector<8x16xf32>
    %88 = arith.select %85, %86, %87 : vector<8x16xi1>, vector<8x16xf32>
    %89 = vector.shape_cast %88 : vector<8x16xf32> to vector<1x8x16xf32>
    %cst_36 = arith.constant dense<0.000000e+00> : vector<1xf32>
    %90 = vector.multi_reduction <add>, %89, %cst_36 [1, 2] : vector<1x8x16xf32> to vector<1xf32>
    %91 = vector.shape_cast %90 : vector<1xf32> to vector<1x1x1xf32>
    %92 = vector.extract %91[0, 0, 0] : f32 from vector<1x1x1xf32>
    %93 = arith.mulf %38, %82 : vector<8x16xf32>
    %94 = vector.shape_cast %93 : vector<8x16xf32> to vector<1x8x16xf32>
    %cst_37 = arith.constant dense<0.000000e+00> : vector<1xf32>
    %95 = vector.multi_reduction <add>, %94, %cst_37 [1, 2] : vector<1x8x16xf32> to vector<1xf32>
    %96 = vector.shape_cast %95 : vector<1xf32> to vector<1x1x1xf32>
    %97 = vector.extract %96[0, 0, 0] : f32 from vector<1x1x1xf32>
    %98 = arith.subf %92, %97 : f32
    %cst_38 = arith.constant 0.000000e+00 : f32
    %99 = vector.broadcast %cst_38 : f32 to vector<8x16xf32>
    %100 = arith.cmpf ogt, %18, %99 : vector<8x16xf32>
    %101 = arith.mulf %18, %16 : vector<8x16xf32>
    %cst_39 = arith.constant 0.000000e+00 : f32
    %102 = vector.broadcast %cst_39 : f32 to vector<8x16xf32>
    %103 = arith.select %100, %101, %102 : vector<8x16xi1>, vector<8x16xf32>
    %104 = vector.shape_cast %103 : vector<8x16xf32> to vector<1x8x16xf32>
    %cst_40 = arith.constant dense<0.000000e+00> : vector<1xf32>
    %105 = vector.multi_reduction <add>, %104, %cst_40 [1, 2] : vector<1x8x16xf32> to vector<1xf32>
    %106 = vector.shape_cast %105 : vector<1xf32> to vector<1x1x1xf32>
    %107 = vector.extract %106[0, 0, 0] : f32 from vector<1x1x1xf32>
    %cst_41 = arith.constant 0.000000e+00 : f32
    %108 = vector.broadcast %cst_41 : f32 to vector<8x16xf32>
    %109 = arith.cmpf ogt, %83, %108 : vector<8x16xf32>
    %110 = arith.mulf %83, %36 : vector<8x16xf32>
    %cst_42 = arith.constant 0.000000e+00 : f32
    %111 = vector.broadcast %cst_42 : f32 to vector<8x16xf32>
    %112 = arith.select %109, %110, %111 : vector<8x16xi1>, vector<8x16xf32>
    %113 = vector.shape_cast %112 : vector<8x16xf32> to vector<1x8x16xf32>
    %cst_43 = arith.constant dense<0.000000e+00> : vector<1xf32>
    %114 = vector.multi_reduction <add>, %113, %cst_43 [1, 2] : vector<1x8x16xf32> to vector<1xf32>
    %115 = vector.shape_cast %114 : vector<1xf32> to vector<1x1x1xf32>
    %116 = vector.extract %115[0, 0, 0] : f32 from vector<1x1x1xf32>
    %117 = arith.subf %107, %116 : f32
    %118 = arith.addf %98, %117 : f32
    %c0_i32 = arith.constant 0 : i32
    %119 = arith.cmpi eq, %arg0, %c0_i32 : i32
    %120 = arith.extui %119 : i1 to i32
    %c0_i32_44 = arith.constant 0 : i32
    %121 = arith.cmpi ne, %120, %c0_i32_44 : i32
    scf.if %121 {
      %cst_49 = arith.constant 0.000000e+00 : f32
      %c0_50 = arith.constant 0 : index
      %128 = memref.load %arg6[%c0_50] : memref<1xf32, #tpu.memory_space<smem>>
      memref.store %cst_49, %arg6[%c0_50] : memref<1xf32, #tpu.memory_space<smem>>
    } else {
    }
    %c0_45 = arith.constant 0 : index
    %122 = memref.load %arg6[%c0_45] : memref<1xf32, #tpu.memory_space<smem>>
    %123 = arith.addf %122, %118 : f32
    %c0_46 = arith.constant 0 : index
    %124 = memref.load %arg6[%c0_46] : memref<1xf32, #tpu.memory_space<smem>>
    memref.store %123, %arg6[%c0_46] : memref<1xf32, #tpu.memory_space<smem>>
    %c0_i32_47 = arith.constant 0 : i32
    %125 = arith.cmpi eq, %arg0, %c0_i32_47 : i32
    %126 = arith.extui %125 : i1 to i32
    %c0_i32_48 = arith.constant 0 : i32
    %127 = arith.cmpi ne, %126, %c0_i32_48 : i32
    scf.if %127 {
      %c0_49 = arith.constant 0 : index
      %128 = memref.load %arg6[%c0_49] : memref<1xf32, #tpu.memory_space<smem>>
      %c0_50 = arith.constant 0 : index
      %c0_51 = arith.constant 0 : index
      %129 = memref.load %arg5[%c0_50, %c0_51] : memref<1x1xf32, #tpu.memory_space<smem>>
      memref.store %128, %arg5[%c0_50, %c0_51] : memref<1x1xf32, #tpu.memory_space<smem>>
    } else {
    }
    return
  }
  func.func @transform_0(%arg0: i32) -> (i32, i32) {
    %c0_i32 = arith.constant 0 : i32
    %c0_i32_0 = arith.constant 0 : i32
    return %arg0, %c0_i32 : i32, i32
  }
  func.func @transform_1(%arg0: i32) -> (i32, i32) {
    %c0_i32 = arith.constant 0 : i32
    %c0_i32_0 = arith.constant 0 : i32
    return %arg0, %c0_i32 : i32, i32
  }
  func.func @transform_2(%arg0: i32) -> (i32, i32) {
    %c0_i32 = arith.constant 0 : i32
    %c0_i32_0 = arith.constant 0 : i32
    return %arg0, %c0_i32 : i32, i32
  }
  func.func @transform_3(%arg0: i32) -> (i32, i32) {
    %c0_i32 = arith.constant 0 : i32
    %c0_i32_0 = arith.constant 0 : i32
    return %arg0, %c0_i32 : i32, i32
  }
  func.func @transform_4(%arg0: i32) -> (i32, i32) {
    %c0_i32 = arith.constant 0 : i32
    %c0_i32_0 = arith.constant 0 : i32
    %c0_i32_1 = arith.constant 0 : i32
    return %c0_i32, %c0_i32_0 : i32, i32
  }
}

</mosaic_0001>

<llo_original>
// kernel: tpu_custom_call.1
$region0: #{tpu_custom_call.1}
  #allocation0 [shape = 'u32[]', space=smem, size = 0x4, offset = 0x4, fixed_abs, tag = 'smem constant byte address 0x4 - core index']
  #allocation1 [shape = 'u32[144,128]{1,0:T(1,128)}', space=vmem, size = 0x12000, scoped, tag = 'internal scratch']
  #allocation2 [shape = 'f32[1]{0:T(128)}', space=smem, size = 0x200, scoped, tag = 'scratch operand']
  %s0 = inlined_call_operand.vmem [shape: f32[8,16], index: 0, kind: input, shape index: {}]
  %s1 = inlined_call_operand.hbm [shape: f32[8,16], index: 1, kind: input, shape index: {}]
  %s2 = inlined_call_operand.vmem [shape: f32[8,1], index: 2, kind: input, shape index: {}]
  %s3 = inlined_call_operand.vmem [shape: f32[8,1], index: 3, kind: output, shape index: {0}]
  %s4 = inlined_call_operand.hbm [shape: f32[1,1], index: 4, kind: output, shape index: {1}]
  %5 = xla_tuple %s3, %s4
  %s6 = sld [smem:[#allocation0]]
  $region42: #{tpu_custom_call.1} parent=0
    _
  %s8 = ssub.s32 1, %s6
  %s9 = scalar_select 0, %s8, %s6
  $region1: #{tpu_custom_call.1} parent=0
    #allocation3 [shape = 'u8[4096]{0}', space=vmem, size = 0x1000, scoped, tag = 'input window, operand 1, single buffered']
    #allocation4 [shape = 's32[1]{0}', space=sflag, size = 0x4, scoped, tag = 'scoped memory for tpu_custom_call.1']
    #allocation5 [shape = 's32[1]{0}', space=sflag, size = 0x4, scoped, tag = 'scoped memory for tpu_custom_call.1']
    #allocation6 [shape = 'u8[512]{0}', space=smem, size = 0x200, scoped, tag = 'output window, operand 1, single buffered']
    %10 = vsyncpa [#allocation4], 0
    %11 = vsyncpa [#allocation5], 0
    // Predicated region
    $region2: #{tpu_custom_call.1} parent=1 // pred_check
      _
    $region3: #{tpu_custom_call.1} parent=1 // pred_check_branch
      %13 = sbr.rel (0) target = $region5
    $region4: #{tpu_custom_call.1} parent=1 // pred_region
      _
    $region5: #{tpu_custom_call.1} parent=1 // pred_fallthru
      _
    // Predicated region
    $region6: #{tpu_custom_call.1} parent=1 // pred_check
      _
    $region7: #{tpu_custom_call.1} parent=1 // pred_check_branch
      %15 = sbr.rel (0) target = $region9
    $region8: #{tpu_custom_call.1} parent=1 // pred_region
      %s17 = ssub.s32 128, 128
      %18 = vsyncadd [#allocation4], %s17
      %s20 = sshll.u32 [#allocation3], 4
      %s21 = int_to_ptr.vmem [resolvable:$true] %s20
      %23 = dma.hbm_to_vmem [thread:$0]  %s1, 128, %s21, [#allocation4]
    $region9: #{tpu_custom_call.1} parent=1 // pred_fallthru
      _
    // Predicated region
    $region10: #{tpu_custom_call.1} parent=1 // pred_check
      _
    $region11: #{tpu_custom_call.1} parent=1 // pred_check_branch
      %25 = sbr.rel (0) target = $region13
    $region12: #{tpu_custom_call.1} parent=1 // pred_region
      _
    $region13: #{tpu_custom_call.1} parent=1 // pred_fallthru
      _
    // Predicated region
    $region14: #{tpu_custom_call.1} parent=1 // pred_check
      _
    $region15: #{tpu_custom_call.1} parent=1 // pred_check_branch
      %27 = sbr.rel (0) target = $region17
    $region16: #{tpu_custom_call.1} parent=1 // pred_region
      %28 = dma.done [#allocation4], 128
    $region17: #{tpu_custom_call.1} parent=1 // pred_fallthru
      _
    %v29 = vld [vmem:[%s0] sm:$0xff]
    %v30 = vld [vmem:[#allocation3] sm:$0xff]
    %v31 = vld [vmem:[%s2] sm:$0xff]
    %v32 = vsub.f32 0.0, %v29
    %v33 = vmax.f32 %v32, 0.0
    %v34 = vand.u32 2147483647, %v32
    %v35 = vsub.f32 0.0, %v34
    %v36 = vmul.f32 %v35, 1.442695
    %v37 = vpow.pop %v36
    %v38 = vadd.f32 %v37, 1.0
    %v39 = vlog2.pop %v38
    %v40 = vmul.f32 %v39, 0.6931472
    %v41 = vadd.f32 %v33, %v40
    %v42 = vsub.f32 0.0, %v41
    %v43 = vsub.f32 %v42, %v29
    %v44 = vmul.f32 %v42, 1.442695
    %v45 = vpow.pop %v44
    %v46 = vmax.f32 %v42, -27.631021
    %v47 = vmax.f32 %v43, -27.631021
    %v48 = vsub.f32 0.0, %v30
    %v49 = vmax.f32 %v48, 0.0
    %v50 = vand.u32 2147483647, %v48
    %v51 = vsub.f32 0.0, %v50
    %v52 = vmul.f32 %v51, 1.442695
    %v53 = vpow.pop %v52
    %v54 = vadd.f32 %v53, 1.0
    %v55 = vlog2.pop %v54
    %v56 = vmul.f32 %v55, 0.6931472
    %v57 = vadd.f32 %v49, %v56
    %v58 = vsub.f32 0.0, %v57
    %v59 = vsub.f32 %v58, %v30
    %v60 = vmul.f32 %v58, 1.442695
    %v61 = vpow.pop %v60
    %v62 = vmax.f32 %v58, -27.631021
    %v63 = vmax.f32 %v59, -27.631021
    %v64 = vsub.f32 0.0, %v31
    %vm65 = vcmask 130048
    %v66 = vsel %vm65, %v46, -inf
    %67 = vmax.xlane.f32.xlu0 %v66
    %v68 = vpop.xlane.xlu0 %67
    %v69 = vmul.f32 %v64, %v68
    %v70 = vsub.f32 1.0, %v31
    %v71 = vsub.f32 0.0, %v70
    %v72 = vsel %vm65, %v47, 0.0
    %73 = vadd.xlane.f32.xlu0 %v72
    %v74 = vpop.xlane.xlu0 %73
    %v75 = vmul.f32 %v74, 0.0625
    %v76 = vmul.f32 %v71, %v75
    %v77 = vsel %vm65, %v62, -inf
    %78 = vmax.xlane.f32.xlu0 %v77
    %v79 = vpop.xlane.xlu0 %78
    %v80 = vmul.f32 %v64, %v79
    %v81 = vsel %vm65, %v63, 0.0
    %82 = vadd.xlane.f32.xlu0 %v81
    %v83 = vpop.xlane.xlu0 %82
    %v84 = vmul.f32 %v83, 0.0625
    %v85 = vmul.f32 %v71, %v84
    %v86 = vadd.f32 %v76, %v69
    %v87 = vadd.f32 %v86, %v80
    %v88 = vadd.f32 %v87, %v85
    %vm89 = vcmask 7168
    %90 = vst.msk [vmem:[%s3] sm:$0xff] %vm89, %v88
    %v91 = vlaneseq
    %v92 = vshrl.u32 %v91, 7
    %v93 = vadd.s32 %v92, 8
    %v94 = vlaneseq
    %v95 = vand.u32 %v94, 127
    %v96 = vadd.s32 %v92, %v95
    %v97 = vadd.s32 %v93, %v95
    %vm98 = vcmp.eq.s32.totalorder %v96, 15
    %vm99 = vcmp.eq.s32.totalorder %v97, 15
    %v100 = vsel %vm98, 1, 0
    %v101 = vsel %vm99, 1, 0
    %v102 = vcvt.s32.f32 %v100
    %v103 = vcvt.s32.f32 %v101
    %v105 = vsel %vm65, %v46, 0
    %107 = vmatprep.subr.mxu0 0.0
    %108 = vmatpush1.msra.mxu0 0.0
    %109 = vmatprep.subr.mxu0 0.0
    %110 = vmatpush1.msra.mxu0 0.0
    %111 = vmatprep.subr.mxu0 0.0
    %112 = vmatpush1.msra.mxu0 0.0
    %113 = vmatprep.subr.mxu0 0.0
    %114 = vmatpush1.msra.mxu0 0.0
    %115 = vmatprep.subr.mxu0 0.0
    %116 = vmatpush1.msra.mxu0 0.0
    %117 = vmatprep.subr.mxu0 0.0
    %118 = vmatpush1.msra.mxu0 0.0
    %119 = vmatprep.subr.mxu0 0.0
    %120 = vmatpush1.msra.mxu0 0.0
    %121 = vmatprep.subr.mxu0 0.0
    %122 = vmatpush1.msra.mxu0 0.0
    %123 = vmatprep.subr.mxu0 0.0
    %124 = vmatpush1.msra.mxu0 0.0
    %125 = vmatprep.subr.mxu0 0.0
    %126 = vmatpush1.msra.mxu0 0.0
    %127 = vmatprep.subr.mxu0 0.0
    %128 = vmatpush1.msra.mxu0 0.0
    %129 = vmatprep.subr.mxu0 0.0
    %130 = vmatpush1.msra.mxu0 0.0
    %131 = vmatprep.subr.mxu0 0.0
    %132 = vmatpush1.msra.mxu0 0.0
    %133 = vmatprep.subr.mxu0 0.0
    %134 = vmatpush1.msra.mxu0 0.0
    %135 = vmatprep.subr.mxu0 0.0
    %v136 = vand.u32 %v103, 4294901760
    %137 = vmatpush1.msra.mxu0 %v136
    %138 = vmatprep.subr.mxu0 0.0
    %v139 = vand.u32 %v102, 4294901760
    %140 = vmatpush1.msra.mxu0 %v139
    %141 = vmatprep.subr.mxu0 0.0
    %142 = vmatpush2.msra.mxu0 0.0
    %143 = vmatprep.subr.mxu0 0.0
    %144 = vmatpush2.msra.mxu0 0.0
    %145 = vmatprep.subr.mxu0 0.0
    %146 = vmatpush2.msra.mxu0 0.0
    %147 = vmatprep.subr.mxu0 0.0
    %148 = vmatpush2.msra.mxu0 0.0
    %149 = vmatprep.subr.mxu0 0.0
    %150 = vmatpush2.msra.mxu0 0.0
    %151 = vmatprep.subr.mxu0 0.0
    %152 = vmatpush2.msra.mxu0 0.0
    %153 = vmatprep.subr.mxu0 0.0
    %154 = vmatpush2.msra.mxu0 0.0
    %155 = vmatprep.subr.mxu0 0.0
    %156 = vmatpush2.msra.mxu0 0.0
    %157 = vmatprep.subr.mxu0 0.0
    %158 = vmatpush2.msra.mxu0 0.0
    %159 = vmatprep.subr.mxu0 0.0
    %160 = vmatpush2.msra.mxu0 0.0
    %161 = vmatprep.subr.mxu0 0.0
    %162 = vmatpush2.msra.mxu0 0.0
    %163 = vmatprep.subr.mxu0 0.0
    %164 = vmatpush2.msra.mxu0 0.0
    %165 = vmatprep.subr.mxu0 0.0
    %166 = vmatpush2.msra.mxu0 0.0
    %167 = vmatprep.subr.mxu0 0.0
    %168 = vmatpush2.msra.mxu0 0.0
    %169 = vmatprep.subr.mxu0 0.0
    %170 = vmatpush2.msra.mxu0 0.0
    %171 = vmatprep.subr.mxu0 0.0
    %172 = vmatpush2.msra.mxu0 0.0
    %173 = vmatprep.mubr.f32.mxu0 0.0
    %v174 = vand.u32 %v105, 4294901760
    %v175 = vsub.f32 %v105, %v174
    %v176 = vand.u32 %v175, 4294901760
    %v177 = vsub.f32 %v175, %v176
    %v178 = vand.u32 %v177, 4294901760
    %179 = vmatmul.mubr.f32.gmra.mxu0 %v178
    %v180 = vpop.f32.mrf.mxu0
    %v181 = vadd.f32 0.0, %v180
    %v182 = vpop.f32.mrf.mxu0
    %183 = vdwg.mxu0
    %184 = vmatprep.subr.mxu0 0.0
    %185 = vmatpush1.msra.mxu0 0.0
    %186 = vmatprep.subr.mxu0 0.0
    %187 = vmatpush1.msra.mxu0 0.0
    %188 = vmatprep.subr.mxu0 0.0
    %189 = vmatpush1.msra.mxu0 0.0
    %190 = vmatprep.subr.mxu0 0.0
    %191 = vmatpush1.msra.mxu0 0.0
    %192 = vmatprep.subr.mxu0 0.0
    %193 = vmatpush1.msra.mxu0 0.0
    %194 = vmatprep.subr.mxu0 0.0
    %195 = vmatpush1.msra.mxu0 0.0
    %196 = vmatprep.subr.mxu0 0.0
    %197 = vmatpush1.msra.mxu0 0.0
    %198 = vmatprep.subr.mxu0 0.0
    %199 = vmatpush1.msra.mxu0 0.0
    %200 = vmatprep.subr.mxu0 0.0
    %201 = vmatpush1.msra.mxu0 0.0
    %202 = vmatprep.subr.mxu0 0.0
    %203 = vmatpush1.msra.mxu0 0.0
    %204 = vmatprep.subr.mxu0 0.0
    %205 = vmatpush1.msra.mxu0 0.0
    %206 = vmatprep.subr.mxu0 0.0
    %207 = vmatpush1.msra.mxu0 0.0
    %208 = vmatprep.subr.mxu0 0.0
    %209 = vmatpush1.msra.mxu0 0.0
    %210 = vmatprep.subr.mxu0 0.0
    %211 = vmatpush1.msra.mxu0 0.0
    %212 = vmatprep.subr.mxu0 0.0
    %v213 = vand.u32 %v103, 4294901760
    %v214 = vsub.f32 %v103, %v213
    %v215 = vand.u32 %v214, 4294901760
    %v216 = vsub.f32 %v214, %v215
    %v217 = vand.u32 %v216, 4294901760
    %218 = vmatpush1.msra.mxu0 %v217
    %219 = vmatprep.subr.mxu0 0.0
    %v220 = vand.u32 %v102, 4294901760
    %v221 = vsub.f32 %v102, %v220
    %v222 = vand.u32 %v221, 4294901760
    %v223 = vsub.f32 %v221, %v222
    %v224 = vand.u32 %v223, 4294901760
    %225 = vmatpush1.msra.mxu0 %v224
    %226 = vmatprep.subr.mxu0 0.0
    %227 = vmatpush2.msra.mxu0 0.0
    %228 = vmatprep.subr.mxu0 0.0
    %229 = vmatpush2.msra.mxu0 0.0
    %230 = vmatprep.subr.mxu0 0.0
    %231 = vmatpush2.msra.mxu0 0.0
    %232 = vmatprep.subr.mxu0 0.0
    %233 = vmatpush2.msra.mxu0 0.0
    %234 = vmatprep.subr.mxu0 0.0
    %235 = vmatpush2.msra.mxu0 0.0
    %236 = vmatprep.subr.mxu0 0.0
    %237 = vmatpush2.msra.mxu0 0.0
    %238 = vmatprep.subr.mxu0 0.0
    %239 = vmatpush2.msra.mxu0 0.0
    %240 = vmatprep.subr.mxu0 0.0
    %241 = vmatpush2.msra.mxu0 0.0
    %242 = vmatprep.subr.mxu0 0.0
    %243 = vmatpush2.msra.mxu0 0.0
    %244 = vmatprep.subr.mxu0 0.0
    %245 = vmatpush2.msra.mxu0 0.0
    %246 = vmatprep.subr.mxu0 0.0
    %247 = vmatpush2.msra.mxu0 0.0
    %248 = vmatprep.subr.mxu0 0.0
    %249 = vmatpush2.msra.mxu0 0.0
    %250 = vmatprep.subr.mxu0 0.0
    %251 = vmatpush2.msra.mxu0 0.0
    %252 = vmatprep.subr.mxu0 0.0
    %253 = vmatpush2.msra.mxu0 0.0
    %254 = vmatprep.subr.mxu0 0.0
    %255 = vmatpush2.msra.mxu0 0.0
    %256 = vmatprep.subr.mxu0 0.0
    %257 = vmatpush2.msra.mxu0 0.0
    %258 = vmatprep.mubr.f32.mxu0 0.0
    %v259 = vand.u32 %v105, 4294901760
    %260 = vmatmul.mubr.f32.gmra.mxu0 %v259
    %v261 = vpop.f32.mrf.mxu0
    %v262 = vadd.f32 %v181, %v261
    %v263 = vpop.f32.mrf.mxu0
    %264 = vdwg.mxu0
    %265 = vmatprep.subr.mxu0 0.0
    %266 = vmatpush1.msra.mxu0 0.0
    %267 = vmatprep.subr.mxu0 0.0
    %268 = vmatpush1.msra.mxu0 0.0
    %269 = vmatprep.subr.mxu0 0.0
    %270 = vmatpush1.msra.mxu0 0.0
    %271 = vmatprep.subr.mxu0 0.0
    %272 = vmatpush1.msra.mxu0 0.0
    %273 = vmatprep.subr.mxu0 0.0
    %274 = vmatpush1.msra.mxu0 0.0
    %275 = vmatprep.subr.mxu0 0.0
    %276 = vmatpush1.msra.mxu0 0.0
    %277 = vmatprep.subr.mxu0 0.0
    %278 = vmatpush1.msra.mxu0 0.0
    %279 = vmatprep.subr.mxu0 0.0
    %280 = vmatpush1.msra.mxu0 0.0
    %281 = vmatprep.subr.mxu0 0.0
    %282 = vmatpush1.msra.mxu0 0.0
    %283 = vmatprep.subr.mxu0 0.0
    %284 = vmatpush1.msra.mxu0 0.0
    %285 = vmatprep.subr.mxu0 0.0
    %286 = vmatpush1.msra.mxu0 0.0
    %287 = vmatprep.subr.mxu0 0.0
    %288 = vmatpush1.msra.mxu0 0.0
    %289 = vmatprep.subr.mxu0 0.0
    %290 = vmatpush1.msra.mxu0 0.0
    %291 = vmatprep.subr.mxu0 0.0
    %292 = vmatpush1.msra.mxu0 0.0
    %293 = vmatprep.subr.mxu0 0.0
    %v294 = vand.u32 %v103, 4294901760
    %v295 = vsub.f32 %v103, %v294
    %296 = vmatpush1.msra.mxu0 %v295
    %297 = vmatprep.subr.mxu0 0.0
    %v298 = vand.u32 %v102, 4294901760
    %v299 = vsub.f32 %v102, %v298
    %300 = vmatpush1.msra.mxu0 %v299
    %301 = vmatprep.subr.mxu0 0.0
    %302 = vmatpush2.msra.mxu0 0.0
    %303 = vmatprep.subr.mxu0 0.0
    %304 = vmatpush2.msra.mxu0 0.0
    %305 = vmatprep.subr.mxu0 0.0
    %306 = vmatpush2.msra.mxu0 0.0
    %307 = vmatprep.subr.mxu0 0.0
    %308 = vmatpush2.msra.mxu0 0.0
    %309 = vmatprep.subr.mxu0 0.0
    %310 = vmatpush2.msra.mxu0 0.0
    %311 = vmatprep.subr.mxu0 0.0
    %312 = vmatpush2.msra.mxu0 0.0
    %313 = vmatprep.subr.mxu0 0.0
    %314 = vmatpush2.msra.mxu0 0.0
    %315 = vmatprep.subr.mxu0 0.0
    %316 = vmatpush2.msra.mxu0 0.0
    %317 = vmatprep.subr.mxu0 0.0
    %318 = vmatpush2.msra.mxu0 0.0
    %319 = vmatprep.subr.mxu0 0.0
    %320 = vmatpush2.msra.mxu0 0.0
    %321 = vmatprep.subr.mxu0 0.0
    %322 = vmatpush2.msra.mxu0 0.0
    %323 = vmatprep.subr.mxu0 0.0
    %324 = vmatpush2.msra.mxu0 0.0
    %325 = vmatprep.subr.mxu0 0.0
    %326 = vmatpush2.msra.mxu0 0.0
    %327 = vmatprep.subr.mxu0 0.0
    %328 = vmatpush2.msra.mxu0 0.0
    %329 = vmatprep.subr.mxu0 0.0
    %330 = vmatpush2.msra.mxu0 0.0
    %331 = vmatprep.subr.mxu0 0.0
    %332 = vmatpush2.msra.mxu0 0.0
    %333 = vmatprep.mubr.f32.mxu0 0.0
    %v334 = vand.u32 %v105, 4294901760
    %v335 = vsub.f32 %v105, %v334
    %336 = vmatmul.mubr.f32.gmra.mxu0 %v335
    %v337 = vpop.f32.mrf.mxu0
    %v338 = vadd.f32 %v262, %v337
    %v339 = vpop.f32.mrf.mxu0
    %340 = vdwg.mxu0
    %341 = vmatprep.subr.mxu0 0.0
    %342 = vmatpush1.msra.mxu0 0.0
    %343 = vmatprep.subr.mxu0 0.0
    %344 = vmatpush1.msra.mxu0 0.0
    %345 = vmatprep.subr.mxu0 0.0
    %346 = vmatpush1.msra.mxu0 0.0
    %347 = vmatprep.subr.mxu0 0.0
    %348 = vmatpush1.msra.mxu0 0.0
    %349 = vmatprep.subr.mxu0 0.0
    %350 = vmatpush1.msra.mxu0 0.0
    %351 = vmatprep.subr.mxu0 0.0
    %352 = vmatpush1.msra.mxu0 0.0
    %353 = vmatprep.subr.mxu0 0.0
    %354 = vmatpush1.msra.mxu0 0.0
    %355 = vmatprep.subr.mxu0 0.0
    %356 = vmatpush1.msra.mxu0 0.0
    %357 = vmatprep.subr.mxu0 0.0
    %358 = vmatpush1.msra.mxu0 0.0
    %359 = vmatprep.subr.mxu0 0.0
    %360 = vmatpush1.msra.mxu0 0.0
    %361 = vmatprep.subr.mxu0 0.0
    %362 = vmatpush1.msra.mxu0 0.0
    %363 = vmatprep.subr.mxu0 0.0
    %364 = vmatpush1.msra.mxu0 0.0
    %365 = vmatprep.subr.mxu0 0.0
    %366 = vmatpush1.msra.mxu0 0.0
    %367 = vmatprep.subr.mxu0 0.0
    %368 = vmatpush1.msra.mxu0 0.0
    %369 = vmatprep.subr.mxu0 0.0
    %v370 = vand.u32 %v103, 4294901760
    %371 = vmatpush1.msra.mxu0 %v370
    %372 = vmatprep.subr.mxu0 0.0
    %v373 = vand.u32 %v102, 4294901760
    %374 = vmatpush1.msra.mxu0 %v373
    %375 = vmatprep.subr.mxu0 0.0
    %376 = vmatpush2.msra.mxu0 0.0
    %377 = vmatprep.subr.mxu0 0.0
    %378 = vmatpush2.msra.mxu0 0.0
    %379 = vmatprep.subr.mxu0 0.0
    %380 = vmatpush2.msra.mxu0 0.0
    %381 = vmatprep.subr.mxu0 0.0
    %382 = vmatpush2.msra.mxu0 0.0
    %383 = vmatprep.subr.mxu0 0.0
    %384 = vmatpush2.msra.mxu0 0.0
    %385 = vmatprep.subr.mxu0 0.0
    %386 = vmatpush2.msra.mxu0 0.0
    %387 = vmatprep.subr.mxu0 0.0
    %388 = vmatpush2.msra.mxu0 0.0
    %389 = vmatprep.subr.mxu0 0.0
    %390 = vmatpush2.msra.mxu0 0.0
    %391 = vmatprep.subr.mxu0 0.0
    %392 = vmatpush2.msra.mxu0 0.0
    %393 = vmatprep.subr.mxu0 0.0
    %394 = vmatpush2.msra.mxu0 0.0
    %395 = vmatprep.subr.mxu0 0.0
    %396 = vmatpush2.msra.mxu0 0.0
    %397 = vmatprep.subr.mxu0 0.0
    %398 = vmatpush2.msra.mxu0 0.0
    %399 = vmatprep.subr.mxu0 0.0
    %400 = vmatpush2.msra.mxu0 0.0
    %401 = vmatprep.subr.mxu0 0.0
    %402 = vmatpush2.msra.mxu0 0.0
    %403 = vmatprep.subr.mxu0 0.0
    %404 = vmatpush2.msra.mxu0 0.0
    %405 = vmatprep.subr.mxu0 0.0
    %406 = vmatpush2.msra.mxu0 0.0
    %407 = vmatprep.mubr.f32.mxu0 0.0
    %v408 = vand.u32 %v105, 4294901760
    %v409 = vsub.f32 %v105, %v408
    %v410 = vand.u32 %v409, 4294901760
    %411 = vmatmul.mubr.f32.gmra.mxu0 %v410
    %v412 = vpop.f32.mrf.mxu0
    %v413 = vadd.f32 %v338, %v412
    %v414 = vpop.f32.mrf.mxu0
    %415 = vdwg.mxu0
    %416 = vmatprep.subr.mxu0 0.0
    %417 = vmatpush1.msra.mxu0 0.0
    %418 = vmatprep.subr.mxu0 0.0
    %419 = vmatpush1.msra.mxu0 0.0
    %420 = vmatprep.subr.mxu0 0.0
    %421 = vmatpush1.msra.mxu0 0.0
    %422 = vmatprep.subr.mxu0 0.0
    %423 = vmatpush1.msra.mxu0 0.0
    %424 = vmatprep.subr.mxu0 0.0
    %425 = vmatpush1.msra.mxu0 0.0
    %426 = vmatprep.subr.mxu0 0.0
    %427 = vmatpush1.msra.mxu0 0.0
    %428 = vmatprep.subr.mxu0 0.0
    %429 = vmatpush1.msra.mxu0 0.0
    %430 = vmatprep.subr.mxu0 0.0
    %431 = vmatpush1.msra.mxu0 0.0
    %432 = vmatprep.subr.mxu0 0.0
    %433 = vmatpush1.msra.mxu0 0.0
    %434 = vmatprep.subr.mxu0 0.0
    %435 = vmatpush1.msra.mxu0 0.0
    %436 = vmatprep.subr.mxu0 0.0
    %437 = vmatpush1.msra.mxu0 0.0
    %438 = vmatprep.subr.mxu0 0.0
    %439 = vmatpush1.msra.mxu0 0.0
    %440 = vmatprep.subr.mxu0 0.0
    %441 = vmatpush1.msra.mxu0 0.0
    %442 = vmatprep.subr.mxu0 0.0
    %443 = vmatpush1.msra.mxu0 0.0
    %444 = vmatprep.subr.mxu0 0.0
    %v445 = vand.u32 %v103, 4294901760
    %v446 = vsub.f32 %v103, %v445
    %v447 = vand.u32 %v446, 4294901760
    %448 = vmatpush1.msra.mxu0 %v447
    %449 = vmatprep.subr.mxu0 0.0
    %v450 = vand.u32 %v102, 4294901760
    %v451 = vsub.f32 %v102, %v450
    %v452 = vand.u32 %v451, 4294901760
    %453 = vmatpush1.msra.mxu0 %v452
    %454 = vmatprep.subr.mxu0 0.0
    %455 = vmatpush2.msra.mxu0 0.0
    %456 = vmatprep.subr.mxu0 0.0
    %457 = vmatpush2.msra.mxu0 0.0
    %458 = vmatprep.subr.mxu0 0.0
    %459 = vmatpush2.msra.mxu0 0.0
    %460 = vmatprep.subr.mxu0 0.0
    %461 = vmatpush2.msra.mxu0 0.0
    %462 = vmatprep.subr.mxu0 0.0
    %463 = vmatpush2.msra.mxu0 0.0
    %464 = vmatprep.subr.mxu0 0.0
    %465 = vmatpush2.msra.mxu0 0.0
    %466 = vmatprep.subr.mxu0 0.0
    %467 = vmatpush2.msra.mxu0 0.0
    %468 = vmatprep.subr.mxu0 0.0
    %469 = vmatpush2.msra.mxu0 0.0
    %470 = vmatprep.subr.mxu0 0.0
    %471 = vmatpush2.msra.mxu0 0.0
    %472 = vmatprep.subr.mxu0 0.0
    %473 = vmatpush2.msra.mxu0 0.0
    %474 = vmatprep.subr.mxu0 0.0
    %475 = vmatpush2.msra.mxu0 0.0
    %476 = vmatprep.subr.mxu0 0.0
    %477 = vmatpush2.msra.mxu0 0.0
    %478 = vmatprep.subr.mxu0 0.0
    %479 = vmatpush2.msra.mxu0 0.0
    %480 = vmatprep.subr.mxu0 0.0
    %481 = vmatpush2.msra.mxu0 0.0
    %482 = vmatprep.subr.mxu0 0.0
    %483 = vmatpush2.msra.mxu0 0.0
    %484 = vmatprep.subr.mxu0 0.0
    %485 = vmatpush2.msra.mxu0 0.0
    %486 = vmatprep.mubr.f32.mxu0 0.0
    %v487 = vand.u32 %v105, 4294901760
    %488 = vmatmul.mubr.f32.gmra.mxu0 %v487
    %v489 = vpop.f32.mrf.mxu0
    %v490 = vadd.f32 %v413, %v489
    %v491 = vpop.f32.mrf.mxu0
    %492 = vdwg.mxu0
    %493 = vmatprep.subr.mxu0 0.0
    %494 = vmatpush1.msra.mxu0 0.0
    %495 = vmatprep.subr.mxu0 0.0
    %496 = vmatpush1.msra.mxu0 0.0
    %497 = vmatprep.subr.mxu0 0.0
    %498 = vmatpush1.msra.mxu0 0.0
    %499 = vmatprep.subr.mxu0 0.0
    %500 = vmatpush1.msra.mxu0 0.0
    %501 = vmatprep.subr.mxu0 0.0
    %502 = vmatpush1.msra.mxu0 0.0
    %503 = vmatprep.subr.mxu0 0.0
    %504 = vmatpush1.msra.mxu0 0.0
    %505 = vmatprep.subr.mxu0 0.0
    %506 = vmatpush1.msra.mxu0 0.0
    %507 = vmatprep.subr.mxu0 0.0
    %508 = vmatpush1.msra.mxu0 0.0
    %509 = vmatprep.subr.mxu0 0.0
    %510 = vmatpush1.msra.mxu0 0.0
    %511 = vmatprep.subr.mxu0 0.0
    %512 = vmatpush1.msra.mxu0 0.0
    %513 = vmatprep.subr.mxu0 0.0
    %514 = vmatpush1.msra.mxu0 0.0
    %515 = vmatprep.subr.mxu0 0.0
    %516 = vmatpush1.msra.mxu0 0.0
    %517 = vmatprep.subr.mxu0 0.0
    %518 = vmatpush1.msra.mxu0 0.0
    %519 = vmatprep.subr.mxu0 0.0
    %520 = vmatpush1.msra.mxu0 0.0
    %521 = vmatprep.subr.mxu0 0.0
    %v522 = vand.u32 %v103, 4294901760
    %523 = vmatpush1.msra.mxu0 %v522
    %524 = vmatprep.subr.mxu0 0.0
    %v525 = vand.u32 %v102, 4294901760
    %526 = vmatpush1.msra.mxu0 %v525
    %527 = vmatprep.subr.mxu0 0.0
    %528 = vmatpush2.msra.mxu0 0.0
    %529 = vmatprep.subr.mxu0 0.0
    %530 = vmatpush2.msra.mxu0 0.0
    %531 = vmatprep.subr.mxu0 0.0
    %532 = vmatpush2.msra.mxu0 0.0
    %533 = vmatprep.subr.mxu0 0.0
    %534 = vmatpush2.msra.mxu0 0.0
    %535 = vmatprep.subr.mxu0 0.0
    %536 = vmatpush2.msra.mxu0 0.0
    %537 = vmatprep.subr.mxu0 0.0
    %538 = vmatpush2.msra.mxu0 0.0
    %539 = vmatprep.subr.mxu0 0.0
    %540 = vmatpush2.msra.mxu0 0.0
    %541 = vmatprep.subr.mxu0 0.0
    %542 = vmatpush2.msra.mxu0 0.0
    %543 = vmatprep.subr.mxu0 0.0
    %544 = vmatpush2.msra.mxu0 0.0
    %545 = vmatprep.subr.mxu0 0.0
    %546 = vmatpush2.msra.mxu0 0.0
    %547 = vmatprep.subr.mxu0 0.0
    %548 = vmatpush2.msra.mxu0 0.0
    %549 = vmatprep.subr.mxu0 0.0
    %550 = vmatpush2.msra.mxu0 0.0
    %551 = vmatprep.subr.mxu0 0.0
    %552 = vmatpush2.msra.mxu0 0.0
    %553 = vmatprep.subr.mxu0 0.0
    %554 = vmatpush2.msra.mxu0 0.0
    %555 = vmatprep.subr.mxu0 0.0
    %556 = vmatpush2.msra.mxu0 0.0
    %557 = vmatprep.subr.mxu0 0.0
    %558 = vmatpush2.msra.mxu0 0.0
    %559 = vmatprep.mubr.f32.mxu0 0.0
    %v560 = vand.u32 %v105, 4294901760
    %561 = vmatmul.mubr.f32.gmra.mxu0 %v560
    %v562 = vpop.f32.mrf.mxu0
    %v563 = vadd.f32 %v490, %v562
    %v564 = vpop.f32.mrf.mxu0
    %565 = vdwg.mxu0
    %v567 = vsel %vm65, %v45, 0
    %569 = vmatprep.subr.mxu0 0.0
    %570 = vmatpush1.msra.mxu0 0.0
    %571 = vmatprep.subr.mxu0 0.0
    %572 = vmatpush1.msra.mxu0 0.0
    %573 = vmatprep.subr.mxu0 0.0
    %574 = vmatpush1.msra.mxu0 0.0
    %575 = vmatprep.subr.mxu0 0.0
    %576 = vmatpush1.msra.mxu0 0.0
    %577 = vmatprep.subr.mxu0 0.0
    %578 = vmatpush1.msra.mxu0 0.0
    %579 = vmatprep.subr.mxu0 0.0
    %580 = vmatpush1.msra.mxu0 0.0
    %581 = vmatprep.subr.mxu0 0.0
    %582 = vmatpush1.msra.mxu0 0.0
    %583 = vmatprep.subr.mxu0 0.0
    %584 = vmatpush1.msra.mxu0 0.0
    %585 = vmatprep.subr.mxu0 0.0
    %586 = vmatpush1.msra.mxu0 0.0
    %587 = vmatprep.subr.mxu0 0.0
    %588 = vmatpush1.msra.mxu0 0.0
    %589 = vmatprep.subr.mxu0 0.0
    %590 = vmatpush1.msra.mxu0 0.0
    %591 = vmatprep.subr.mxu0 0.0
    %592 = vmatpush1.msra.mxu0 0.0
    %593 = vmatprep.subr.mxu0 0.0
    %594 = vmatpush1.msra.mxu0 0.0
    %595 = vmatprep.subr.mxu0 0.0
    %596 = vmatpush1.msra.mxu0 0.0
    %597 = vmatprep.subr.mxu0 0.0
    %v598 = vand.u32 %v103, 4294901760
    %599 = vmatpush1.msra.mxu0 %v598
    %600 = vmatprep.subr.mxu0 0.0
    %v601 = vand.u32 %v102, 4294901760
    %602 = vmatpush1.msra.mxu0 %v601
    %603 = vmatprep.subr.mxu0 0.0
    %604 = vmatpush2.msra.mxu0 0.0
    %605 = vmatprep.subr.mxu0 0.0
    %606 = vmatpush2.msra.mxu0 0.0
    %607 = vmatprep.subr.mxu0 0.0
    %608 = vmatpush2.msra.mxu0 0.0
    %609 = vmatprep.subr.mxu0 0.0
    %610 = vmatpush2.msra.mxu0 0.0
    %611 = vmatprep.subr.mxu0 0.0
    %612 = vmatpush2.msra.mxu0 0.0
    %613 = vmatprep.subr.mxu0 0.0
    %614 = vmatpush2.msra.mxu0 0.0
    %615 = vmatprep.subr.mxu0 0.0
    %616 = vmatpush2.msra.mxu0 0.0
    %617 = vmatprep.subr.mxu0 0.0
    %618 = vmatpush2.msra.mxu0 0.0
    %619 = vmatprep.subr.mxu0 0.0
    %620 = vmatpush2.msra.mxu0 0.0
    %621 = vmatprep.subr.mxu0 0.0
    %622 = vmatpush2.msra.mxu0 0.0
    %623 = vmatprep.subr.mxu0 0.0
    %624 = vmatpush2.msra.mxu0 0.0
    %625 = vmatprep.subr.mxu0 0.0
    %626 = vmatpush2.msra.mxu0 0.0
    %627 = vmatprep.subr.mxu0 0.0
    %628 = vmatpush2.msra.mxu0 0.0
    %629 = vmatprep.subr.mxu0 0.0
    %630 = vmatpush2.msra.mxu0 0.0
    %631 = vmatprep.subr.mxu0 0.0
    %632 = vmatpush2.msra.mxu0 0.0
    %633 = vmatprep.subr.mxu0 0.0
    %634 = vmatpush2.msra.mxu0 0.0
    %635 = vmatprep.mubr.f32.mxu0 0.0
    %v636 = vand.u32 %v567, 4294901760
    %v637 = vsub.f32 %v567, %v636
    %v638 = vand.u32 %v637, 4294901760
    %v639 = vsub.f32 %v637, %v638
    %v640 = vand.u32 %v639, 4294901760
    %641 = vmatmul.mubr.f32.gmra.mxu0 %v640
    %v642 = vpop.f32.mrf.mxu0
    %v643 = vadd.f32 0.0, %v642
    %v644 = vpop.f32.mrf.mxu0
    %645 = vdwg.mxu0
    %646 = vmatprep.subr.mxu0 0.0
    %647 = vmatpush1.msra.mxu0 0.0
    %648 = vmatprep.subr.mxu0 0.0
    %649 = vmatpush1.msra.mxu0 0.0
    %650 = vmatprep.subr.mxu0 0.0
    %651 = vmatpush1.msra.mxu0 0.0
    %652 = vmatprep.subr.mxu0 0.0
    %653 = vmatpush1.msra.mxu0 0.0
    %654 = vmatprep.subr.mxu0 0.0
    %655 = vmatpush1.msra.mxu0 0.0
    %656 = vmatprep.subr.mxu0 0.0
    %657 = vmatpush1.msra.mxu0 0.0
    %658 = vmatprep.subr.mxu0 0.0
    %659 = vmatpush1.msra.mxu0 0.0
    %660 = vmatprep.subr.mxu0 0.0
    %661 = vmatpush1.msra.mxu0 0.0
    %662 = vmatprep.subr.mxu0 0.0
    %663 = vmatpush1.msra.mxu0 0.0
    %664 = vmatprep.subr.mxu0 0.0
    %665 = vmatpush1.msra.mxu0 0.0
    %666 = vmatprep.subr.mxu0 0.0
    %667 = vmatpush1.msra.mxu0 0.0
    %668 = vmatprep.subr.mxu0 0.0
    %669 = vmatpush1.msra.mxu0 0.0
    %670 = vmatprep.subr.mxu0 0.0
    %671 = vmatpush1.msra.mxu0 0.0
    %672 = vmatprep.subr.mxu0 0.0
    %673 = vmatpush1.msra.mxu0 0.0
    %674 = vmatprep.subr.mxu0 0.0
    %v675 = vand.u32 %v103, 4294901760
    %v676 = vsub.f32 %v103, %v675
    %v677 = vand.u32 %v676, 4294901760
    %v678 = vsub.f32 %v676, %v677
    %v679 = vand.u32 %v678, 4294901760
    %680 = vmatpush1.msra.mxu0 %v679
    %681 = vmatprep.subr.mxu0 0.0
    %v682 = vand.u32 %v102, 4294901760
    %v683 = vsub.f32 %v102, %v682
    %v684 = vand.u32 %v683, 4294901760
    %v685 = vsub.f32 %v683, %v684
    %v686 = vand.u32 %v685, 4294901760
    %687 = vmatpush1.msra.mxu0 %v686
    %688 = vmatprep.subr.mxu0 0.0
    %689 = vmatpush2.msra.mxu0 0.0
    %690 = vmatprep.subr.mxu0 0.0
    %691 = vmatpush2.msra.mxu0 0.0
    %692 = vmatprep.subr.mxu0 0.0
    %693 = vmatpush2.msra.mxu0 0.0
    %694 = vmatprep.subr.mxu0 0.0
    %695 = vmatpush2.msra.mxu0 0.0
    %696 = vmatprep.subr.mxu0 0.0
    %697 = vmatpush2.msra.mxu0 0.0
    %698 = vmatprep.subr.mxu0 0.0
    %699 = vmatpush2.msra.mxu0 0.0
    %700 = vmatprep.subr.mxu0 0.0
    %701 = vmatpush2.msra.mxu0 0.0
    %702 = vmatprep.subr.mxu0 0.0
    %703 = vmatpush2.msra.mxu0 0.0
    %704 = vmatprep.subr.mxu0 0.0
    %705 = vmatpush2.msra.mxu0 0.0
    %706 = vmatprep.subr.mxu0 0.0
    %707 = vmatpush2.msra.mxu0 0.0
    %708 = vmatprep.subr.mxu0 0.0
    %709 = vmatpush2.msra.mxu0 0.0
    %710 = vmatprep.subr.mxu0 0.0
    %711 = vmatpush2.msra.mxu0 0.0
    %712 = vmatprep.subr.mxu0 0.0
    %713 = vmatpush2.msra.mxu0 0.0
    %714 = vmatprep.subr.mxu0 0.0
    %715 = vmatpush2.msra.mxu0 0.0
    %716 = vmatprep.subr.mxu0 0.0
    %717 = vmatpush2.msra.mxu0 0.0
    %718 = vmatprep.subr.mxu0 0.0
    %719 = vmatpush2.msra.mxu0 0.0
    %720 = vmatprep.mubr.f32.mxu0 0.0
    %v721 = vand.u32 %v567, 4294901760
    %722 = vmatmul.mubr.f32.gmra.mxu0 %v721
    %v723 = vpop.f32.mrf.mxu0
    %v724 = vadd.f32 %v643, %v723
    %v725 = vpop.f32.mrf.mxu0
    %726 = vdwg.mxu0
    %727 = vmatprep.subr.mxu0 0.0
    %728 = vmatpush1.msra.mxu0 0.0
    %729 = vmatprep.subr.mxu0 0.0
    %730 = vmatpush1.msra.mxu0 0.0
    %731 = vmatprep.subr.mxu0 0.0
    %732 = vmatpush1.msra.mxu0 0.0
    %733 = vmatprep.subr.mxu0 0.0
    %734 = vmatpush1.msra.mxu0 0.0
    %735 = vmatprep.subr.mxu0 0.0
    %736 = vmatpush1.msra.mxu0 0.0
    %737 = vmatprep.subr.mxu0 0.0
    %738 = vmatpush1.msra.mxu0 0.0
    %739 = vmatprep.subr.mxu0 0.0
    %740 = vmatpush1.msra.mxu0 0.0
    %741 = vmatprep.subr.mxu0 0.0
    %742 = vmatpush1.msra.mxu0 0.0
    %743 = vmatprep.subr.mxu0 0.0
    %744 = vmatpush1.msra.mxu0 0.0
    %745 = vmatprep.subr.mxu0 0.0
    %746 = vmatpush1.msra.mxu0 0.0
    %747 = vmatprep.subr.mxu0 0.0
    %748 = vmatpush1.msra.mxu0 0.0
    %749 = vmatprep.subr.mxu0 0.0
    %750 = vmatpush1.msra.mxu0 0.0
    %751 = vmatprep.subr.mxu0 0.0
    %752 = vmatpush1.msra.mxu0 0.0
    %753 = vmatprep.subr.mxu0 0.0
    %754 = vmatpush1.msra.mxu0 0.0
    %755 = vmatprep.subr.mxu0 0.0
    %v756 = vand.u32 %v103, 4294901760
    %v757 = vsub.f32 %v103, %v756
    %758 = vmatpush1.msra.mxu0 %v757
    %759 = vmatprep.subr.mxu0 0.0
    %v760 = vand.u32 %v102, 4294901760
    %v761 = vsub.f32 %v102, %v760
    %762 = vmatpush1.msra.mxu0 %v761
    %763 = vmatprep.subr.mxu0 0.0
    %764 = vmatpush2.msra.mxu0 0.0
    %765 = vmatprep.subr.mxu0 0.0
    %766 = vmatpush2.msra.mxu0 0.0
    %767 = vmatprep.subr.mxu0 0.0
    %768 = vmatpush2.msra.mxu0 0.0
    %769 = vmatprep.subr.mxu0 0.0
    %770 = vmatpush2.msra.mxu0 0.0
    %771 = vmatprep.subr.mxu0 0.0
    %772 = vmatpush2.msra.mxu0 0.0
    %773 = vmatprep.subr.mxu0 0.0
    %774 = vmatpush2.msra.mxu0 0.0
    %775 = vmatprep.subr.mxu0 0.0
    %776 = vmatpush2.msra.mxu0 0.0
    %777 = vmatprep.subr.mxu0 0.0
    %778 = vmatpush2.msra.mxu0 0.0
    %779 = vmatprep.subr.mxu0 0.0
    %780 = vmatpush2.msra.mxu0 0.0
    %781 = vmatprep.subr.mxu0 0.0
    %782 = vmatpush2.msra.mxu0 0.0
    %783 = vmatprep.subr.mxu0 0.0
    %784 = vmatpush2.msra.mxu0 0.0
    %785 = vmatprep.subr.mxu0 0.0
    %786 = vmatpush2.msra.mxu0 0.0
    %787 = vmatprep.subr.mxu0 0.0
    %788 = vmatpush2.msra.mxu0 0.0
    %789 = vmatprep.subr.mxu0 0.0
    %790 = vmatpush2.msra.mxu0 0.0
    %791 = vmatprep.subr.mxu0 0.0
    %792 = vmatpush2.msra.mxu0 0.0
    %793 = vmatprep.subr.mxu0 0.0
    %794 = vmatpush2.msra.mxu0 0.0
    %795 = vmatprep.mubr.f32.mxu0 0.0
    %v796 = vand.u32 %v567, 4294901760
    %v797 = vsub.f32 %v567, %v796
    %798 = vmatmul.mubr.f32.gmra.mxu0 %v797
    %v799 = vpop.f32.mrf.mxu0
    %v800 = vadd.f32 %v724, %v799
    %v801 = vpop.f32.mrf.mxu0
    %802 = vdwg.mxu0
    %803 = vmatprep.subr.mxu0 0.0
    %804 = vmatpush1.msra.mxu0 0.0
    %805 = vmatprep.subr.mxu0 0.0
    %806 = vmatpush1.msra.mxu0 0.0
    %807 = vmatprep.subr.mxu0 0.0
    %808 = vmatpush1.msra.mxu0 0.0
    %809 = vmatprep.subr.mxu0 0.0
    %810 = vmatpush1.msra.mxu0 0.0
    %811 = vmatprep.subr.mxu0 0.0
    %812 = vmatpush1.msra.mxu0 0.0
    %813 = vmatprep.subr.mxu0 0.0
    %814 = vmatpush1.msra.mxu0 0.0
    %815 = vmatprep.subr.mxu0 0.0
    %816 = vmatpush1.msra.mxu0 0.0
    %817 = vmatprep.subr.mxu0 0.0
    %818 = vmatpush1.msra.mxu0 0.0
    %819 = vmatprep.subr.mxu0 0.0
    %820 = vmatpush1.msra.mxu0 0.0
    %821 = vmatprep.subr.mxu0 0.0
    %822 = vmatpush1.msra.mxu0 0.0
    %823 = vmatprep.subr.mxu0 0.0
    %824 = vmatpush1.msra.mxu0 0.0
    %825 = vmatprep.subr.mxu0 0.0
    %826 = vmatpush1.msra.mxu0 0.0
    %827 = vmatprep.subr.mxu0 0.0
    %828 = vmatpush1.msra.mxu0 0.0
    %829 = vmatprep.subr.mxu0 0.0
    %830 = vmatpush1.msra.mxu0 0.0
    %831 = vmatprep.subr.mxu0 0.0
    %v832 = vand.u32 %v103, 4294901760
    %833 = vmatpush1.msra.mxu0 %v832
    %834 = vmatprep.subr.mxu0 0.0
    %v835 = vand.u32 %v102, 4294901760
    %836 = vmatpush1.msra.mxu0 %v835
    %837 = vmatprep.subr.mxu0 0.0
    %838 = vmatpush2.msra.mxu0 0.0
    %839 = vmatprep.subr.mxu0 0.0
    %840 = vmatpush2.msra.mxu0 0.0
    %841 = vmatprep.subr.mxu0 0.0
    %842 = vmatpush2.msra.mxu0 0.0
    %843 = vmatprep.subr.mxu0 0.0
    %844 = vmatpush2.msra.mxu0 0.0
    %845 = vmatprep.subr.mxu0 0.0
    %846 = vmatpush2.msra.mxu0 0.0
    %847 = vmatprep.subr.mxu0 0.0
    %848 = vmatpush2.msra.mxu0 0.0
    %849 = vmatprep.subr.mxu0 0.0
    %850 = vmatpush2.msra.mxu0 0.0
    %851 = vmatprep.subr.mxu0 0.0
    %852 = vmatpush2.msra.mxu0 0.0
    %853 = vmatprep.subr.mxu0 0.0
    %854 = vmatpush2.msra.mxu0 0.0
    %855 = vmatprep.subr.mxu0 0.0
    %856 = vmatpush2.msra.mxu0 0.0
    %857 = vmatprep.subr.mxu0 0.0
    %858 = vmatpush2.msra.mxu0 0.0
    %859 = vmatprep.subr.mxu0 0.0
    %860 = vmatpush2.msra.mxu0 0.0
    %861 = vmatprep.subr.mxu0 0.0
    %862 = vmatpush2.msra.mxu0 0.0
    %863 = vmatprep.subr.mxu0 0.0
    %864 = vmatpush2.msra.mxu0 0.0
    %865 = vmatprep.subr.mxu0 0.0
    %866 = vmatpush2.msra.mxu0 0.0
    %867 = vmatprep.subr.mxu0 0.0
    %868 = vmatpush2.msra.mxu0 0.0
    %869 = vmatprep.mubr.f32.mxu0 0.0
    %v870 = vand.u32 %v567, 4294901760
    %v871 = vsub.f32 %v567, %v870
    %v872 = vand.u32 %v871, 4294901760
    %873 = vmatmul.mubr.f32.gmra.mxu0 %v872
    %v874 = vpop.f32.mrf.mxu0
    %v875 = vadd.f32 %v800, %v874
    %v876 = vpop.f32.mrf.mxu0
    %877 = vdwg.mxu0
    %878 = vmatprep.subr.mxu0 0.0
    %879 = vmatpush1.msra.mxu0 0.0
    %880 = vmatprep.subr.mxu0 0.0
    %881 = vmatpush1.msra.mxu0 0.0
    %882 = vmatprep.subr.mxu0 0.0
    %883 = vmatpush1.msra.mxu0 0.0
    %884 = vmatprep.subr.mxu0 0.0
    %885 = vmatpush1.msra.mxu0 0.0
    %886 = vmatprep.subr.mxu0 0.0
    %887 = vmatpush1.msra.mxu0 0.0
    %888 = vmatprep.subr.mxu0 0.0
    %889 = vmatpush1.msra.mxu0 0.0
    %890 = vmatprep.subr.mxu0 0.0
    %891 = vmatpush1.msra.mxu0 0.0
    %892 = vmatprep.subr.mxu0 0.0
    %893 = vmatpush1.msra.mxu0 0.0
    %894 = vmatprep.subr.mxu0 0.0
    %895 = vmatpush1.msra.mxu0 0.0
    %896 = vmatprep.subr.mxu0 0.0
    %897 = vmatpush1.msra.mxu0 0.0
    %898 = vmatprep.subr.mxu0 0.0
    %899 = vmatpush1.msra.mxu0 0.0
    %900 = vmatprep.subr.mxu0 0.0
    %901 = vmatpush1.msra.mxu0 0.0
    %902 = vmatprep.subr.mxu0 0.0
    %903 = vmatpush1.msra.mxu0 0.0
    %904 = vmatprep.subr.mxu0 0.0
    %905 = vmatpush1.msra.mxu0 0.0
    %906 = vmatprep.subr.mxu0 0.0
    %v907 = vand.u32 %v103, 4294901760
    %v908 = vsub.f32 %v103, %v907
    %v909 = vand.u32 %v908, 4294901760
    %910 = vmatpush1.msra.mxu0 %v909
    %911 = vmatprep.subr.mxu0 0.0
    %v912 = vand.u32 %v102, 4294901760
    %v913 = vsub.f32 %v102, %v912
    %v914 = vand.u32 %v913, 4294901760
    %915 = vmatpush1.msra.mxu0 %v914
    %916 = vmatprep.subr.mxu0 0.0
    %917 = vmatpush2.msra.mxu0 0.0
    %918 = vmatprep.subr.mxu0 0.0
    %919 = vmatpush2.msra.mxu0 0.0
    %920 = vmatprep.subr.mxu0 0.0
    %921 = vmatpush2.msra.mxu0 0.0
    %922 = vmatprep.subr.mxu0 0.0
    %923 = vmatpush2.msra.mxu0 0.0
    %924 = vmatprep.subr.mxu0 0.0
    %925 = vmatpush2.msra.mxu0 0.0
    %926 = vmatprep.subr.mxu0 0.0
    %927 = vmatpush2.msra.mxu0 0.0
    %928 = vmatprep.subr.mxu0 0.0
    %929 = vmatpush2.msra.mxu0 0.0
    %930 = vmatprep.subr.mxu0 0.0
    %931 = vmatpush2.msra.mxu0 0.0
    %932 = vmatprep.subr.mxu0 0.0
    %933 = vmatpush2.msra.mxu0 0.0
    %934 = vmatprep.subr.mxu0 0.0
    %935 = vmatpush2.msra.mxu0 0.0
    %936 = vmatprep.subr.mxu0 0.0
    %937 = vmatpush2.msra.mxu0 0.0
    %938 = vmatprep.subr.mxu0 0.0
    %939 = vmatpush2.msra.mxu0 0.0
    %940 = vmatprep.subr.mxu0 0.0
    %941 = vmatpush2.msra.mxu0 0.0
    %942 = vmatprep.subr.mxu0 0.0
    %943 = vmatpush2.msra.mxu0 0.0
    %944 = vmatprep.subr.mxu0 0.0
    %945 = vmatpush2.msra.mxu0 0.0
    %946 = vmatprep.subr.mxu0 0.0
    %947 = vmatpush2.msra.mxu0 0.0
    %948 = vmatprep.mubr.f32.mxu0 0.0
    %v949 = vand.u32 %v567, 4294901760
    %950 = vmatmul.mubr.f32.gmra.mxu0 %v949
    %v951 = vpop.f32.mrf.mxu0
    %v952 = vadd.f32 %v875, %v951
    %v953 = vpop.f32.mrf.mxu0
    %954 = vdwg.mxu0
    %955 = vmatprep.subr.mxu0 0.0
    %956 = vmatpush1.msra.mxu0 0.0
    %957 = vmatprep.subr.mxu0 0.0
    %958 = vmatpush1.msra.mxu0 0.0
    %959 = vmatprep.subr.mxu0 0.0
    %960 = vmatpush1.msra.mxu0 0.0
    %961 = vmatprep.subr.mxu0 0.0
    %962 = vmatpush1.msra.mxu0 0.0
    %963 = vmatprep.subr.mxu0 0.0
    %964 = vmatpush1.msra.mxu0 0.0
    %965 = vmatprep.subr.mxu0 0.0
    %966 = vmatpush1.msra.mxu0 0.0
    %967 = vmatprep.subr.mxu0 0.0
    %968 = vmatpush1.msra.mxu0 0.0
    %969 = vmatprep.subr.mxu0 0.0
    %970 = vmatpush1.msra.mxu0 0.0
    %971 = vmatprep.subr.mxu0 0.0
    %972 = vmatpush1.msra.mxu0 0.0
    %973 = vmatprep.subr.mxu0 0.0
    %974 = vmatpush1.msra.mxu0 0.0
    %975 = vmatprep.subr.mxu0 0.0
    %976 = vmatpush1.msra.mxu0 0.0
    %977 = vmatprep.subr.mxu0 0.0
    %978 = vmatpush1.msra.mxu0 0.0
    %979 = vmatprep.subr.mxu0 0.0
    %980 = vmatpush1.msra.mxu0 0.0
    %981 = vmatprep.subr.mxu0 0.0
    %982 = vmatpush1.msra.mxu0 0.0
    %983 = vmatprep.subr.mxu0 0.0
    %v984 = vand.u32 %v103, 4294901760
    %985 = vmatpush1.msra.mxu0 %v984
    %986 = vmatprep.subr.mxu0 0.0
    %v987 = vand.u32 %v102, 4294901760
    %988 = vmatpush1.msra.mxu0 %v987
    %989 = vmatprep.subr.mxu0 0.0
    %990 = vmatpush2.msra.mxu0 0.0
    %991 = vmatprep.subr.mxu0 0.0
    %992 = vmatpush2.msra.mxu0 0.0
    %993 = vmatprep.subr.mxu0 0.0
    %994 = vmatpush2.msra.mxu0 0.0
    %995 = vmatprep.subr.mxu0 0.0
    %996 = vmatpush2.msra.mxu0 0.0
    %997 = vmatprep.subr.mxu0 0.0
    %998 = vmatpush2.msra.mxu0 0.0
    %999 = vmatprep.subr.mxu0 0.0
    %1000 = vmatpush2.msra.mxu0 0.0
    %1001 = vmatprep.subr.mxu0 0.0
    %1002 = vmatpush2.msra.mxu0 0.0
    %1003 = vmatprep.subr.mxu0 0.0
    %1004 = vmatpush2.msra.mxu0 0.0
    %1005 = vmatprep.subr.mxu0 0.0
    %1006 = vmatpush2.msra.mxu0 0.0
    %1007 = vmatprep.subr.mxu0 0.0
    %1008 = vmatpush2.msra.mxu0 0.0
    %1009 = vmatprep.subr.mxu0 0.0
    %1010 = vmatpush2.msra.mxu0 0.0
    %1011 = vmatprep.subr.mxu0 0.0
    %1012 = vmatpush2.msra.mxu0 0.0
    %1013 = vmatprep.subr.mxu0 0.0
    %1014 = vmatpush2.msra.mxu0 0.0
    %1015 = vmatprep.subr.mxu0 0.0
    %1016 = vmatpush2.msra.mxu0 0.0
    %1017 = vmatprep.subr.mxu0 0.0
    %1018 = vmatpush2.msra.mxu0 0.0
    %1019 = vmatprep.subr.mxu0 0.0
    %1020 = vmatpush2.msra.mxu0 0.0
    %1021 = vmatprep.mubr.f32.mxu0 0.0
    %v1022 = vand.u32 %v567, 4294901760
    %1023 = vmatmul.mubr.f32.gmra.mxu0 %v1022
    %v1024 = vpop.f32.mrf.mxu0
    %v1025 = vadd.f32 %v952, %v1024
    %v1026 = vpop.f32.mrf.mxu0
    %1027 = vdwg.mxu0
    %vm1028 = vcmp.gt.f32.partialorder %v61, 0.0
    %v1029 = vmul.f32 %v61, %v58
    %v1030 = vsel %vm1028, %v1029, 0.0
    %v1031 = vsel %vm65, %v1030, 0.0
    %1032 = vadd.xlane.f32.xlu0 %v1031
    %v1033 = vpop.xlane.xlu0 %1032
    %v1034 = vrot.slane %v1033, 4
    %v1035 = vadd.f32 %v1033, %v1034
    %v1036 = vrot.slane %v1035, 2
    %v1037 = vadd.f32 %v1035, %v1036
    %v1038 = vrot.slane %v1037, 1
    %v1039 = vadd.f32 %v1037, %v1038
    %s1040 = vtos %v1039
    %v1041 = vmul.f32 %v61, %v563
    %v1042 = vsel %vm65, %v1041, 0.0
    %1043 = vadd.xlane.f32.xlu0 %v1042
    %v1044 = vpop.xlane.xlu0 %1043
    %v1045 = vrot.slane %v1044, 4
    %v1046 = vadd.f32 %v1044, %v1045
    %v1047 = vrot.slane %v1046, 2
    %v1048 = vadd.f32 %v1046, %v1047
    %v1049 = vrot.slane %v1048, 1
    %v1050 = vadd.f32 %v1048, %v1049
    %s1051 = vtos %v1050
    %s1052 = ssub.f32 %s1040, %s1051
    %vm1053 = vcmp.gt.f32.partialorder %v45, 0.0
    %v1054 = vmul.f32 %v45, %v42
    %v1055 = vsel %vm1053, %v1054, 0.0
    %v1056 = vsel %vm65, %v1055, 0.0
    %1057 = vadd.xlane.f32.xlu0 %v1056
    %v1058 = vpop.xlane.xlu0 %1057
    %v1059 = vrot.slane %v1058, 4
    %v1060 = vadd.f32 %v1058, %v1059
    %v1061 = vrot.slane %v1060, 2
    %v1062 = vadd.f32 %v1060, %v1061
    %v1063 = vrot.slane %v1062, 1
    %v1064 = vadd.f32 %v1062, %v1063
    %s1065 = vtos %v1064
    %vm1066 = vcmp.gt.f32.partialorder %v1025, 0.0
    %v1067 = vmul.f32 %v1025, %v58
    %v1068 = vsel %vm1066, %v1067, 0.0
    %v1069 = vsel %vm65, %v1068, 0.0
    %1070 = vadd.xlane.f32.xlu0 %v1069
    %v1071 = vpop.xlane.xlu0 %1070
    %v1072 = vrot.slane %v1071, 4
    %v1073 = vadd.f32 %v1071, %v1072
    %v1074 = vrot.slane %v1073, 2
    %v1075 = vadd.f32 %v1073, %v1074
    %v1076 = vrot.slane %v1075, 1
    %v1077 = vadd.f32 %v1075, %v1076
    %s1078 = vtos %v1077
    %s1079 = ssub.f32 %s1065, %s1078
    %s1080 = sadd.f32 %s1052, %s1079
    %p1081 = scmp.eq.s32.totalorder 0, 0
    // Predicated region
    $region18: #{tpu_custom_call.1} parent=1 // pred_check
      %p1082 = pneg %p1081
    $region19: #{tpu_custom_call.1} parent=1 // pred_check_branch
      %1084 = sbr.rel (%p1082) target = $region21
    $region20: #{tpu_custom_call.1} parent=1 // pred_region
      %s1085 = scalar_lea.smem [#allocation2], 0
      %1086 = sst [smem:[%s1085]] 0.0
    $region21: #{tpu_custom_call.1} parent=1 // pred_fallthru
      _
    %s1087 = sld [smem:[#allocation2]]
    %s1088 = sadd.f32 %s1087, %s1080
    %s1089 = scalar_lea.smem [#allocation2], 0
    %1090 = sst [smem:[%s1089]] %s1088
    // Predicated region
    $region22: #{tpu_custom_call.1} parent=1 // pred_check
      %p1091 = pneg %p1081
    $region23: #{tpu_custom_call.1} parent=1 // pred_check_branch
      %1093 = sbr.rel (%p1091) target = $region25
    $region24: #{tpu_custom_call.1} parent=1 // pred_region
      %s1094 = sld [smem:[#allocation2]]
      %s1095 = scalar_lea.smem [#allocation6], 0
      %1096 = sst [smem:[%s1095]] %s1094
    $region25: #{tpu_custom_call.1} parent=1 // pred_fallthru
      _
    // Predicated region
    $region26: #{tpu_custom_call.1} parent=1 // pred_check
      _
    $region27: #{tpu_custom_call.1} parent=1 // pred_check_branch
      %1098 = sbr.rel (0) target = $region29
    $region28: #{tpu_custom_call.1} parent=1 // pred_region
      _
    $region29: #{tpu_custom_call.1} parent=1 // pred_fallthru
      _
    // Predicated region
    $region30: #{tpu_custom_call.1} parent=1 // pred_check
      _
    $region31: #{tpu_custom_call.1} parent=1 // pred_check_branch
      %1100 = sbr.rel (0) target = $region33
    $region32: #{tpu_custom_call.1} parent=1 // pred_region
      %s1102 = ssub.s32 16, 16
      %1103 = vsyncadd [#allocation5], %s1102
      %1106 = dma.smem_to_hbm [#allocation6], 16, %s4, [#allocation5]
    $region33: #{tpu_custom_call.1} parent=1 // pred_fallthru
      _
    // Predicated region
    $region34: #{tpu_custom_call.1} parent=1 // pred_check
      _
    $region35: #{tpu_custom_call.1} parent=1 // pred_check_branch
      %1108 = sbr.rel (0) target = $region37
    $region36: #{tpu_custom_call.1} parent=1 // pred_region
      _
    $region37: #{tpu_custom_call.1} parent=1 // pred_fallthru
      _
    // Predicated region
    $region38: #{tpu_custom_call.1} parent=1 // pred_check
      _
    $region39: #{tpu_custom_call.1} parent=1 // pred_check_branch
      %1110 = sbr.rel (0) target = $region41
    $region40: #{tpu_custom_call.1} parent=1 // pred_region
      %1111 = dma.done [#allocation5], 16
    $region41: #{tpu_custom_call.1} parent=1 // pred_fallthru
      _
    %1112 = sfence
    %1113 = vsyncpa [#allocation4], 1
    %1114 = vsyncpa [#allocation5], 1

</llo_original>
